<compile_context>
chip_gen: v6e
topology: v6e:2x2x1
jax: 0.10.0
libtpu: 0.0.40
codegen_flags: <defaults>
</compile_context>

<pallas_src>
from dataclasses import dataclass
from typing import Any, Dict

import jax
import jax.numpy as jnp
from jax import lax
from jax.experimental import pallas as pl
from jax.experimental.pallas import tpu as pltpu


def _round_up(x: int, m: int) -> int:
    return ((x + m - 1) // m) * m


def _cdiv(a: int, b: int) -> int:
    return (a + b - 1) // b


def _vmem_capacity_bytes() -> int:
    """Per-generation VMEM capacity (v5e/v6e: 128 MiB, v7x: 64 MiB/TC)."""
    try:
        info = pltpu.get_tpu_info()
        cap = getattr(info, "vmem_capacity_bytes", None)
        if cap:
            return int(cap)
    except Exception:
        pass
    return 64 * 1024 * 1024  # conservative default (v7x per-TensorCore VMEM)


@dataclass
class AgentInput:
    mission_embeddings: Any
    states: Any
    actions: Any
    rewards: Any
    returns_to_go: Any
    timesteps: Any
    feedback_embeddings: Any
    attention_mask: Any


class Agent:
    """Faithful port of the abstract base class: both hooks are no-ops."""

    def _forward(self, input: AgentInput) -> Any:
        # TODO(synk): abstract in the PyTorch source (body is `pass`).
        return None

    def _compute_loss(self, input: AgentInput, output: Any):
        # TODO(synk): abstract in the PyTorch source (body is `pass`).
        return None

    def forward(self, input: AgentInput, **kwargs) -> Dict:
        output = self._forward(input)
        loss = self._compute_loss(input, output)
        return {"loss": loss}

    def get_action(self, input: AgentInput, context=1, one_hot=False):
        # TODO(synk): abstract in the PyTorch source (body is `pass`).
        pass

    # TODO(synk): save_checkpoint / load_checkpoint are torch.save/torch.load
    # file I/O with no Pallas equivalent; intentionally omitted.


# ----------------------------------------------------------------------------
# Pallas kernel: linear action head + per-tile masked squared-error scalar.
# ----------------------------------------------------------------------------
def _make_head_kernel(bt_total: int, tile_bt: int, act_dim: int,
                      with_preds: bool):
    def kernel(states_ref, am_ref, w_ref, b_ref, *out_refs):
        # states_ref : (TILE_BT, S)        f32, VMEM (grid-tiled over B*T)
        # am_ref     : (TILE_BT, AM_LANES) f32, VMEM (actions lanes 0..A-1,
        #                                             mask at lane A)
        # w_ref      : (S, A_PAD)          bf16, VMEM (resident, zero-padded)
        # b_ref      : (1, A_PAD)          f32,  VMEM (resident, zero-padded)
        # outputs:  [preds_ref (TILE_BT, A) f32]  +  partial_ref (1, 1, 1) f32
        if with_preds:
            preds_ref, partial_ref = out_refs
        else:
            (partial_ref,) = out_refs

        i = pl.program_id(0)

        # f32 -> bf16 cast in VMEM (no host-side astype pass over states),
        # MXU matmul with f32 accumulation, bias add.
        states_bf = states_ref[...].astype(jnp.bfloat16)
        preds = jnp.dot(states_bf, w_ref[...],
                        preferred_element_type=jnp.float32) + b_ref[...]

        # Ragged last tile: rows past bt_total hold stale VMEM -> mask them
        # out of both the error sum and the (optional) preds store.
        row_ids = lax.broadcasted_iota(jnp.int32, (tile_bt, 1), 0) + i * tile_bt
        row_valid = row_ids < bt_total

        actions = am_ref[:, :act_dim]                      # (TILE_BT, A)
        mask = am_ref[:, act_dim:act_dim + 1]              # (TILE_BT, 1)

        if with_preds:
            # Compact lane store; out-of-range rows are also trimmed by Pallas.
            preds_ref[...] = jnp.where(row_valid, preds[:, :act_dim], 0.0)

        diff = preds[:, :act_dim] - actions
        # Lane reduce first (XLU, otherwise idle), then sublane reduce.
        err_rows = jnp.sum(diff * diff, axis=1, keepdims=True) * mask
        err_rows = jnp.where(row_valid, err_rows, 0.0)     # (TILE_BT, 1)
        partial_ref[0] = jnp.sum(err_rows, axis=0, keepdims=True)   # (1, 1)

    return kernel


def agent_head_pallas(states, actions, attention_mask, w, b, *,
                      tile_bt: int = 1024, with_preds: bool = False):
    """states: (B, T, S), actions: (B, T, A), attention_mask: (B, T).

    Returns (preds (B, T, A) f32 or None, err_partials (num_tiles, 1, 1) f32).
    """
    B, T, S = states.shape
    A = actions.shape[-1]
    BT = B * T

    A_PAD = _round_up(A, 128)           # matmul / VMEM side only
    AM_LANES = _round_up(A + 1, 8)      # fused actions+mask slab width

    # ---- host-side layout: no pad / no astype pass over the states stream --
    states_2d = states.reshape(BT, S).astype(jnp.float32)
    actions_2d = actions.reshape(BT, A).astype(jnp.float32)
    mask_2d = attention_mask.reshape(BT, 1).astype(jnp.float32)
    am = jnp.concatenate([actions_2d, mask_2d], axis=1)
    if AM_LANES > A + 1:
        am = jnp.pad(am, ((0, 0), (0, AM_LANES - (A + 1))))

    w_pad = jnp.pad(w.astype(jnp.bfloat16), ((0, 0), (0, A_PAD - A)))
    b_pad = jnp.pad(b.astype(jnp.float32).reshape(1, A),
                    ((0, 0), (0, A_PAD - A)))

    # ---- tile selection -----------------------------------------------------
    TILE_BT = min(tile_bt, _round_up(BT, 8))
    # Keep >= 2 grid tiles whenever BT allows (megacore sharding on v7x).
    if BT >= 16 and _cdiv(BT, TILE_BT) < 2:
        TILE_BT = _round_up(_cdiv(BT, 2), 8)

    lane = lambda d: _round_up(max(d, 1), 128)

    def est_vmem(tile: int) -> int:
        per_tile = (tile * lane(S) * 4 * 2                       # states f32 x2
                    + tile * lane(AM_LANES) * 4 * 2              # fused am x2
                    + (tile * lane(A) * 4 * 2 if with_preds else 0)
                    + 8 * 128 * 4 * 2)                           # partials
        resident = _round_up(S, 16) * A_PAD * 2 + 8 * A_PAD * 4  # W bf16 + b
        scratch = tile * lane(S) * 2 + tile * A_PAD * 4          # bf16 + preds
        return per_tile + resident + scratch

    vmem_cap = _vmem_capacity_bytes()
    budget = min(28 * 1024 * 1024,
                 max(8 * 1024 * 1024, vmem_cap // 2 - (4 << 20)))
    while est_vmem(TILE_BT) > budget and TILE_BT > 8:
        TILE_BT = max(8, _round_up(TILE_BT // 2, 8))

    num_tiles = _cdiv(BT, TILE_BT)
    vmem_limit = int(max(16 * 1024 * 1024,
                         min(est_vmem(TILE_BT) + (4 << 20),
                             vmem_cap - (4 << 20))))

    cost = pl.CostEstimate(
        flops=2 * BT * S * A_PAD,
        transcendentals=0,
        bytes_accessed=(BT * S * 4 + BT * AM_LANES * 4
                        + S * A_PAD * 2 + A_PAD * 4
                        + (BT * A * 4 if with_preds else 0)
                        + num_tiles * 4),
    )

    kernel = _make_head_kernel(BT, TILE_BT, A, with_preds)

    in_specs = [
        pl.BlockSpec((TILE_BT, S), lambda i: (i, 0)),           # states
        pl.BlockSpec((TILE_BT, AM_LANES), lambda i: (i, 0)),    # actions+mask
        pl.BlockSpec((S, A_PAD), lambda i: (0, 0)),             # W (resident)
        pl.BlockSpec((1, A_PAD), lambda i: (0, 0)),             # b (resident)
    ]
    partial_spec = pl.BlockSpec((1, 1, 1), lambda i: (i, 0, 0))
    partial_shape = jax.ShapeDtypeStruct((num_tiles, 1, 1), jnp.float32)

    if with_preds:
        out_specs = (pl.BlockSpec((TILE_BT, A), lambda i: (i, 0)), partial_spec)
        out_shape = (jax.ShapeDtypeStruct((BT, A), jnp.float32), partial_shape)
    else:
        out_specs = partial_spec
        out_shape = partial_shape

    result = pl.pallas_call(
        kernel,
        grid=(num_tiles,),
        in_specs=in_specs,
        out_specs=out_specs,
        out_shape=out_shape,
        compiler_params=pltpu.CompilerParams(
            dimension_semantics=("parallel",),   # shard tiles over TCs on v7x
            vmem_limit_bytes=vmem_limit,
        ),
        cost_estimate=cost,
    )(states_2d, am, w_pad, b_pad)

    if with_preds:
        preds_2d, partials = result
        return preds_2d.reshape(B, T, A), partials
    return None, result


class LinearAgent(Agent):
    """Minimal concrete Agent whose forward compute runs in the Pallas kernel."""

    def __init__(self, state_dim: int, act_dim: int, key):
        self.state_dim = state_dim
        self.act_dim = act_dim
        k_w, _ = jax.random.split(key)
        self.w = (jax.random.normal(k_w, (state_dim, act_dim), jnp.float32)
                  / jnp.sqrt(jnp.float32(state_dim)))
        self.b = jnp.zeros((act_dim,), jnp.float32)

    def _forward(self, input: AgentInput):
        # Training path: loss-only kernel variant -> no preds HBM writeback.
        _, err_partials = agent_head_pallas(
            input.states, input.actions, input.attention_mask,
            self.w, self.b, with_preds=False)
        return {"err_partials": err_partials}

    def _compute_loss(self, input: AgentInput, output: Any):
        err_sum = jnp.sum(output["err_partials"])
        mask_sum = jnp.sum(input.attention_mask.astype(jnp.float32))
        denom = mask_sum * jnp.float32(self.act_dim)
        # Guard the all-masked-out case (denom == 0) against NaN/Inf.
        return jnp.where(denom > 0, err_sum / jnp.maximum(denom, 1e-9),
                         jnp.float32(0.0))

    def get_action(self, input: AgentInput, context=1, one_hot=False):
        preds, _ = agent_head_pallas(
            input.states, input.actions, input.attention_mask,
            self.w, self.b, with_preds=True)
        act = preds[:, -1]
        if one_hot:
            act = jax.nn.one_hot(jnp.argmax(act, axis=-1), self.act_dim,
                                 dtype=act.dtype)
        return act


def _reference_loss_and_preds(states, actions, attention_mask, w, b):
    """Plain-JAX reference with the same bf16 matmul / f32 accumulate."""
    B, T, S = states.shape
    A = actions.shape[-1]
    BT = B * T
    preds = jnp.dot(states.reshape(BT, S).astype(jnp.bfloat16),
                    w.astype(jnp.bfloat16),
                    preferred_element_type=jnp.float32) + b[None, :]
    actions_2d = actions.reshape(BT, A).astype(jnp.float32)
    mask = attention_mask.reshape(BT, 1).astype(jnp.float32)
    denom = jnp.sum(mask) * A
    loss = jnp.sum(mask * (preds - actions_2d) ** 2) / jnp.maximum(denom, 1e-9)
    return loss, preds


if __name__ == "__main__":
    key = jax.random.PRNGKey(0)
    k1, k2, k3, k4, k5, k6, kp, kr = jax.random.split(key, 8)

    B, T, state_dim, act_dim, mission_dim = 2, 8, 32, 4, 16
    BT = B * T

    inp = AgentInput(
        mission_embeddings=jax.random.normal(k1, (B, T, mission_dim), jnp.float32),
        states=jax.random.normal(k2, (B, T, state_dim), jnp.float32),
        actions=jax.random.normal(k3, (B, T, act_dim), jnp.float32),
        rewards=jax.random.normal(k4, (B, T, 1), jnp.float32),
        returns_to_go=jax.random.normal(k5, (B, T, 1), jnp.float32),
        timesteps=jnp.tile(jnp.arange(T, dtype=jnp.int32)[None, :], (B, 1)),
        feedback_embeddings=jax.random.normal(k6, (B, T, mission_dim), jnp.float32),
        attention_mask=jnp.ones((B, T), jnp.float32),
    )

    # Literal base-class semantics: no compute, loss is None.
    base_out = Agent().forward(inp)
    assert base_out["loss"] is None

    # Pallas-backed minimal concrete agent (loss-only kernel hot path).
    agent = LinearAgent(state_dim, act_dim, kp)
    out = agent.forward(inp)
    loss = jax.block_until_ready(out["loss"])

    loss_ref, preds_ref = _reference_loss_and_preds(
        inp.states, inp.actions, inp.attention_mask, agent.w, agent.b)
    assert jnp.isfinite(loss)
    assert jnp.allclose(loss, loss_ref, rtol=1e-3, atol=1e-3), (loss, loss_ref)

    # Preds variant (compact (B, T, A) output).
    preds, _ = agent_head_pallas(inp.states, inp.actions, inp.attention_mask,
                                 agent.w, agent.b, with_preds=True)
    preds = jax.block_until_ready(preds)
    assert jnp.allclose(preds.reshape(BT, act_dim), preds_ref,
                        rtol=1e-2, atol=1e-2)

    # Ragged-tile + partial-mask check: BT=21 is not a multiple of the tile,
    # exercising the in-kernel row masking on the last partial tile.
    B2, T2 = 3, 7
    kr1, kr2, kr3 = jax.random.split(kr, 3)
    states2 = jax.random.normal(kr1, (B2, T2, state_dim), jnp.float32)
    actions2 = jax.random.normal(kr2, (B2, T2, act_dim), jnp.float32)
    mask2 = (jax.random.uniform(kr3, (B2, T2)) > 0.3).astype(jnp.float32)
    inp2 = AgentInput(
        mission_embeddings=None, states=states2, actions=actions2,
        rewards=None, returns_to_go=None, timesteps=None,
        feedback_embeddings=None, attention_mask=mask2)
    loss2 = jax.block_until_ready(agent.forward(inp2)["loss"])
    loss2_ref, _ = _reference_loss_and_preds(states2, actions2, mask2,
                                             agent.w, agent.b)
    assert jnp.isfinite(loss2)
    assert jnp.allclose(loss2, loss2_ref, rtol=1e-3, atol=1e-3), (loss2, loss2_ref)

    print("KERNEL_OK")
</pallas_src>

<mosaic_0001>
module attributes {stable_mosaic.version = 11 : i64} {
  func.func @kernel(%arg0: i32, %arg1: memref<8x32xf32, #tpu.memory_space<vmem>>, %arg2: memref<8x8xf32, #tpu.memory_space<vmem>>, %arg3: memref<32x128xbf16, #tpu.memory_space<vmem>>, %arg4: memref<1x128xf32, #tpu.memory_space<vmem>>, %arg5: memref<1x1x1xf32, #tpu.memory_space<vmem>>) attributes {dimension_semantics = [#tpu.dimension_semantics<parallel>], iteration_bounds = array<i64: 2>, scalar_prefetch = 0 : i64, scratch_operands = 0 : i64, tpu.core_type = #tpu.core_type<tc>, window_params = [{transform_indices = @transform_0, window_bounds = array<i64: 8, 32>}, {transform_indices = @transform_1, window_bounds = array<i64: 8, 8>}, {pipeline_mode = #tpu.pipeline_mode<synchronous>, transform_indices = @transform_2, window_bounds = array<i64: 32, 128>}, {pipeline_mode = #tpu.pipeline_mode<synchronous>, transform_indices = @transform_3, window_bounds = array<i64: 1, 128>}, {transform_indices = @transform_4, window_bounds = array<i64: 1, 1, 1>}]} {
    %c0 = arith.constant 0 : index
    %c0_0 = arith.constant 0 : index
    %0 = vector.load %arg1[%c0, %c0_0] : memref<8x32xf32, #tpu.memory_space<vmem>>, vector<8x32xf32>
    %1 = arith.truncf %0 : vector<8x32xf32> to vector<8x32xbf16>
    %c0_1 = arith.constant 0 : index
    %c0_2 = arith.constant 0 : index
    %2 = vector.load %arg3[%c0_1, %c0_2] : memref<32x128xbf16, #tpu.memory_space<vmem>>, vector<32x128xbf16>
    %cst = arith.constant dense<0.000000e+00> : vector<8x128xf32>
    %3 = tpu.matmul %1, %2, %cst {dimension_numbers = #tpu.dot_dimension_numbers<[1], [0], [0], [1], [0, 0, 1, 1], [], []>} : vector<8x32xbf16>, vector<32x128xbf16>, vector<8x128xf32> -> vector<8x128xf32>
    %c0_3 = arith.constant 0 : index
    %c0_4 = arith.constant 0 : index
    %4 = vector.load %arg4[%c0_3, %c0_4] : memref<1x128xf32, #tpu.memory_space<vmem>>, vector<1x128xf32>
    %5 = vector.broadcast %4 : vector<1x128xf32> to vector<8x128xf32>
    %6 = arith.addf %3, %5 : vector<8x128xf32>
    %7 = tpu.iota {dimensions = array<i32: 0>} : vector<8x1xi32>
    %c8_i32 = arith.constant 8 : i32
    %8 = arith.muli %arg0, %c8_i32 : i32
    %9 = vector.broadcast %8 : i32 to vector<8x1xi32>
    %10 = arith.addi %7, %9 : vector<8x1xi32>
    %c16_i32 = arith.constant 16 : i32
    %11 = vector.broadcast %c16_i32 : i32 to vector<8x1xi32>
    %12 = arith.cmpi slt, %10, %11 : vector<8x1xi32>
    %c0_5 = arith.constant 0 : index
    %c0_6 = arith.constant 0 : index
    %13 = vector.load %arg2[%c0_5, %c0_6] : memref<8x8xf32, #tpu.memory_space<vmem>>, vector<8x4xf32>
    %c0_7 = arith.constant 0 : index
    %c4 = arith.constant 4 : index
    %14 = vector.load %arg2[%c0_7, %c4] : memref<8x8xf32, #tpu.memory_space<vmem>>, vector<8x1xf32>
    %15 = vector.extract_strided_slice %6 {offsets = [0, 0], sizes = [8, 4], strides = [1, 1]} : vector<8x128xf32> to vector<8x4xf32>
    %16 = arith.subf %15, %13 : vector<8x4xf32>
    %17 = arith.mulf %16, %16 : vector<8x4xf32>
    %cst_8 = arith.constant dense<0.000000e+00> : vector<8xf32>
    %18 = vector.multi_reduction <add>, %17, %cst_8 [1] : vector<8x4xf32> to vector<8xf32>
    %19 = vector.shape_cast %18 : vector<8xf32> to vector<8x1xf32>
    %20 = arith.mulf %19, %14 : vector<8x1xf32>
    %cst_9 = arith.constant 0.000000e+00 : f32
    %21 = vector.broadcast %cst_9 : f32 to vector<8x1xf32>
    %22 = arith.select %12, %20, %21 : vector<8x1xi1>, vector<8x1xf32>
    %cst_10 = arith.constant dense<0.000000e+00> : vector<1xf32>
    %23 = vector.multi_reduction <add>, %22, %cst_10 [0] : vector<8x1xf32> to vector<1xf32>
    %24 = vector.shape_cast %23 : vector<1xf32> to vector<1x1xf32>
    %c0_11 = arith.constant 0 : index
    %c0_12 = arith.constant 0 : index
    %c0_13 = arith.constant 0 : index
    %25 = vector.load %arg5[%c0_11, %c0_12, %c0_13] : memref<1x1x1xf32, #tpu.memory_space<vmem>>, vector<1x1x1xf32>
    %26 = vector.shape_cast %25 : vector<1x1x1xf32> to vector<1x1xf32>
    %27 = vector.shape_cast %24 : vector<1x1xf32> to vector<1x1x1xf32>
    tpu.vector_store %arg5[%c0_11, %c0_12, %c0_13], %27 {strides = array<i32>} : memref<1x1x1xf32, #tpu.memory_space<vmem>>, vector<1x1x1xf32>,
    return
  }
  func.func @transform_0(%arg0: i32) -> (i32, i32) {
    %c0_i32 = arith.constant 0 : i32
    %c0_i32_0 = arith.constant 0 : i32
    return %arg0, %c0_i32 : i32, i32
  }
  func.func @transform_1(%arg0: i32) -> (i32, i32) {
    %c0_i32 = arith.constant 0 : i32
    %c0_i32_0 = arith.constant 0 : i32
    return %arg0, %c0_i32 : i32, i32
  }
  func.func @transform_2(%arg0: i32) -> (i32, i32) {
    %c0_i32 = arith.constant 0 : i32
    %c0_i32_0 = arith.constant 0 : i32
    %c0_i32_1 = arith.constant 0 : i32
    return %c0_i32, %c0_i32_0 : i32, i32
  }
  func.func @transform_3(%arg0: i32) -> (i32, i32) {
    %c0_i32 = arith.constant 0 : i32
    %c0_i32_0 = arith.constant 0 : i32
    %c0_i32_1 = arith.constant 0 : i32
    return %c0_i32, %c0_i32_0 : i32, i32
  }
  func.func @transform_4(%arg0: i32) -> (i32, i32, i32) {
    %c0_i32 = arith.constant 0 : i32
    %c0_i32_0 = arith.constant 0 : i32
    %c0_i32_1 = arith.constant 0 : i32
    return %arg0, %c0_i32, %c0_i32_0 : i32, i32, i32
  }
}

</mosaic_0001>

<llo_original>
// kernel: tpu_custom_call.1
$region0: #{tpu_custom_call.1}
  #allocation0 [shape = 'u32[]', space=smem, size = 0x4, offset = 0x4, fixed_abs, tag = 'smem constant byte address 0x4 - core index']
  #allocation1 [shape = 'u32[144,128]{1,0:T(1,128)}', space=vmem, size = 0x12000, scoped, tag = 'internal scratch']
  %s0 = inlined_call_operand.vmem [shape: f32[16,32], index: 0, kind: input, shape index: {}]
  %s1 = inlined_call_operand.vmem [shape: f32[16,8], index: 1, kind: input, shape index: {}]
  %s2 = inlined_call_operand.hbm [shape: bf16[32,128], index: 2, kind: input, shape index: {}]
  %s3 = inlined_call_operand.vmem [shape: f32[1,128], index: 3, kind: input, shape index: {}]
  %s4 = inlined_call_operand.vmem [shape: f32[2,1,1], index: 4, kind: output, shape index: {}]
  %s5 = sld [smem:[#allocation0]]
  $region53: #{tpu_custom_call.1} parent=0
    _
  %s7 = ssub.s32 1, %s5
  %s8 = scalar_select 0, %s7, %s5
  $region1: #{tpu_custom_call.1} parent=0
    #allocation2 [shape = 'u8[8192]{0}', space=vmem, size = 0x2000, scoped, tag = 'input window, operand 2, single buffered']
    #allocation3 [shape = 's32[2]{0}', space=sflag, size = 0x8, scoped, tag = 'scoped memory for tpu_custom_call.1']
    %9 = vsyncpa [#allocation3], 0
    loop: start=0, step=1, limit=4
    $region2: #{tpu_custom_call.1} parent=1 // loop_pre_header
      _
    $region3: #{tpu_custom_call.1} parent=1 // loop_header
      %s11 = sphi 0, %s15
      %p12 = scmp.ge.s32.totalorder %s11, 4
      %s21 = sphi 0, %s23
      %s24 = sphi 0, %s21
      %s25 = sphi 0, %s24
      %s41 = sphi 0, %s25
      %s47 = sphi 0, %s49
      %s50 = sphi 0, %s47
      %s51 = sphi 0, %s50
      %s67 = sphi 0, %s51
      %s71 = sphi 0, %s71
      %s73 = sphi 0, %s71
      %s74 = sphi 0, %s73
      %s88 = sphi 0, %s74
      %s92 = sphi 0, %s92
      %s94 = sphi 0, %s92
      %s95 = sphi 0, %s94
      %s109 = sphi 0, %s95
      %s115 = sphi 0, %s117
      %s118 = sphi 0, %s115
      %s119 = sphi 0, %s118
      %s135 = sphi 0, %s119
    $region4: #{tpu_custom_call.1} parent=1 // loop_header_branch
      %14 = sbr.rel (%p12) target = $region8
    $region5: #{tpu_custom_call.1} parent=1 // loop_body
      %s16 = ssub.s32 %s11, 1
      %s17 = ssub.s32 %s11, 2
      %s18 = sadd.s32 %s11, 1
      %s19 = ssub.s32 %s11, %s18
      %p20 = scmp.eq.s32.totalorder %s19, 0
      %s22 = sadd.s32 %s21, 1
      %s23 = scalar_select %p20, %s21, %s22
      %p26 = pneg %p20
      %p27 = scmp.eq.s32.totalorder %s11, 1
      %p28 = por %p26, %p27
      %p29 = scmp.ne.s32.totalorder %s21, %s24
      %p30 = scmp.eq.s32.totalorder %s11, 0
      %p31 = por %p29, %p30
      %p32 = scmp.ne.s32.totalorder %s21, %s24
      %p33 = scmp.eq.s32.totalorder %s16, 1
      %p34 = por %p32, %p33
      %p35 = scmp.ne.s32.totalorder %s24, %s25
      %p36 = scmp.eq.s32.totalorder %s16, 0
      %p37 = por %p35, %p36
      %p38 = scmp.ne.s32.totalorder %s24, %s25
      %p39 = scmp.eq.s32.totalorder %s17, 1
      %p40 = por %p38, %p39
      %p42 = scmp.ne.s32.totalorder %s25, %s41
      %p43 = scmp.eq.s32.totalorder %s17, 0
      %p44 = por %p42, %p43
      %s45 = ssub.s32 %s11, %s18
      %p46 = scmp.eq.s32.totalorder %s45, 0
      %s48 = sadd.s32 %s47, 1
      %s49 = scalar_select %p46, %s47, %s48
      %p52 = pneg %p46
      %p53 = scmp.eq.s32.totalorder %s11, 1
      %p54 = por %p52, %p53
      %p55 = scmp.ne.s32.totalorder %s47, %s50
      %p56 = scmp.eq.s32.totalorder %s11, 0
      %p57 = por %p55, %p56
      %p58 = scmp.ne.s32.totalorder %s47, %s50
      %p59 = scmp.eq.s32.totalorder %s16, 1
      %p60 = por %p58, %p59
      %p61 = scmp.ne.s32.totalorder %s50, %s51
      %p62 = scmp.eq.s32.totalorder %s16, 0
      %p63 = por %p61, %p62
      %p64 = scmp.ne.s32.totalorder %s50, %s51
      %p65 = scmp.eq.s32.totalorder %s17, 1
      %p66 = por %p64, %p65
      %p68 = scmp.ne.s32.totalorder %s51, %s67
      %p69 = scmp.eq.s32.totalorder %s17, 0
      %p70 = por %p68, %p69
      %s72 = sadd.s32 %s71, 1
      %p75 = scmp.eq.s32.totalorder %s11, 1
      %p76 = scmp.ne.s32.totalorder %s71, %s73
      %p77 = scmp.eq.s32.totalorder %s11, 0
      %p78 = por %p76, %p77
      %p79 = scmp.ne.s32.totalorder %s71, %s73
      %p80 = scmp.eq.s32.totalorder %s16, 1
      %p81 = por %p79, %p80
      %p82 = scmp.ne.s32.totalorder %s73, %s74
      %p83 = scmp.eq.s32.totalorder %s16, 0
      %p84 = por %p82, %p83
      %p85 = scmp.ne.s32.totalorder %s73, %s74
      %p86 = scmp.eq.s32.totalorder %s17, 1
      %p87 = por %p85, %p86
      %p89 = scmp.ne.s32.totalorder %s74, %s88
      %p90 = scmp.eq.s32.totalorder %s17, 0
      %p91 = por %p89, %p90
      %s93 = sadd.s32 %s92, 1
      %p96 = scmp.eq.s32.totalorder %s11, 1
      %p97 = scmp.ne.s32.totalorder %s92, %s94
      %p98 = scmp.eq.s32.totalorder %s11, 0
      %p99 = por %p97, %p98
      %p100 = scmp.ne.s32.totalorder %s92, %s94
      %p101 = scmp.eq.s32.totalorder %s16, 1
      %p102 = por %p100, %p101
      %p103 = scmp.ne.s32.totalorder %s94, %s95
      %p104 = scmp.eq.s32.totalorder %s16, 0
      %p105 = por %p103, %p104
      %p106 = scmp.ne.s32.totalorder %s94, %s95
      %p107 = scmp.eq.s32.totalorder %s17, 1
      %p108 = por %p106, %p107
      %p110 = scmp.ne.s32.totalorder %s95, %s109
      %p111 = scmp.eq.s32.totalorder %s17, 0
      %p112 = por %p110, %p111
      %s113 = ssub.s32 %s11, %s18
      %p114 = scmp.eq.s32.totalorder %s113, 0
      %s116 = sadd.s32 %s115, 1
      %s117 = scalar_select %p114, %s115, %s116
      %p120 = pneg %p114
      %p121 = scmp.eq.s32.totalorder %s11, 1
      %p122 = por %p120, %p121
      %p123 = scmp.ne.s32.totalorder %s115, %s118
      %p124 = scmp.eq.s32.totalorder %s11, 0
      %p125 = por %p123, %p124
      %p126 = scmp.ne.s32.totalorder %s115, %s118
      %p127 = scmp.eq.s32.totalorder %s16, 1
      %p128 = por %p126, %p127
      %p129 = scmp.ne.s32.totalorder %s118, %s119
      %p130 = scmp.eq.s32.totalorder %s16, 0
      %p131 = por %p129, %p130
      %p132 = scmp.ne.s32.totalorder %s118, %s119
      %p133 = scmp.eq.s32.totalorder %s17, 1
      %p134 = por %p132, %p133
      %p136 = scmp.ne.s32.totalorder %s119, %s135
      %p137 = scmp.eq.s32.totalorder %s17, 0
      %p138 = por %p136, %p137
      %p139 = scmp.le.s32.totalorder 1, %s11
      %p140 = scmp.lt.s32.totalorder %s11, 3
      %p141 = pnand %p139, %p140
      %p142 = pneg %p141
      // Predicated region
      $region9: #{tpu_custom_call.1} parent=5 // pred_check
        _
      $region10: #{tpu_custom_call.1} parent=5 // pred_check_branch
        %144 = sbr.rel (%p141) target = $region12
      $region11: #{tpu_custom_call.1} parent=5 // pred_region
        %s145 = ssub.s32 %s11, 1
        // Predicated region
        $region13: #{tpu_custom_call.1} parent=11 // pred_check
          %p146 = pneg %p84
        $region14: #{tpu_custom_call.1} parent=11 // pred_check_branch
          %148 = sbr.rel (%p146) target = $region16
        $region15: #{tpu_custom_call.1} parent=11 // pred_region
          %s150 = ssub.s32 256, 256
          %151 = vsyncadd [#allocation3], %s150
          %s152 = sshll.u32 [#allocation2], 4
          %s153 = int_to_ptr.vmem [resolvable:$true] %s152
          %158 = dma.hbm_to_vmem [thread:$0]  %s2, 256, %s153, [#allocation3], 64, 64, 4
        $region16: #{tpu_custom_call.1} parent=11 // pred_fallthru
          _
        // Predicated region
        $region17: #{tpu_custom_call.1} parent=11 // pred_check
          %p159 = pneg %p105
        $region18: #{tpu_custom_call.1} parent=11 // pred_check_branch
          %161 = sbr.rel (%p159) target = $region20
        $region19: #{tpu_custom_call.1} parent=11 // pred_region
          _
        $region20: #{tpu_custom_call.1} parent=11 // pred_fallthru
          _
      $region12: #{tpu_custom_call.1} parent=5 // pred_fallthru
        _
      %p162 = scmp.lt.s32.totalorder %s11, 2
      // Predicated region
      $region21: #{tpu_custom_call.1} parent=5 // pred_check
        %p163 = pneg %p162
      $region22: #{tpu_custom_call.1} parent=5 // pred_check_branch
        %165 = sbr.rel (%p163) target = $region24
      $region23: #{tpu_custom_call.1} parent=5 // pred_region
        // Predicated region
        $region25: #{tpu_custom_call.1} parent=23 // pred_check
          %p166 = pneg %p31
        $region26: #{tpu_custom_call.1} parent=23 // pred_check_branch
          %168 = sbr.rel (%p166) target = $region28
        $region27: #{tpu_custom_call.1} parent=23 // pred_region
          %p169 = scmp.lt.s32.totalorder %s11, 1
          %s170 = scalar_select %p169, %s11, 1
          %s171 = smul.addr %s170, 8
          %s172 = scalar_lea.vmem %s0, %s171
        $region28: #{tpu_custom_call.1} parent=23 // pred_fallthru
          _
        // Predicated region
        $region29: #{tpu_custom_call.1} parent=23 // pred_check
          %p173 = pneg %p57
        $region30: #{tpu_custom_call.1} parent=23 // pred_check_branch
          %175 = sbr.rel (%p173) target = $region32
        $region31: #{tpu_custom_call.1} parent=23 // pred_region
          %p176 = scmp.lt.s32.totalorder %s11, 1
          %s177 = scalar_select %p176, %s11, 1
          %s178 = smul.addr %s177, 8
          %s179 = scalar_lea.vmem %s1, %s178
        $region32: #{tpu_custom_call.1} parent=23 // pred_fallthru
          _
      $region24: #{tpu_custom_call.1} parent=5 // pred_fallthru
        _
      %p180 = scmp.le.s32.totalorder 1, %s11
      %p181 = scmp.lt.s32.totalorder %s11, 3
      %p182 = pnand %p180, %p181
      %p183 = pneg %p182
      // Predicated region
      $region33: #{tpu_custom_call.1} parent=5 // pred_check
        _
      $region34: #{tpu_custom_call.1} parent=5 // pred_check_branch
        %185 = sbr.rel (%p182) target = $region36
      $region35: #{tpu_custom_call.1} parent=5 // pred_region
        %s186 = ssub.s32 %s11, 1
        // Predicated region
        $region37: #{tpu_custom_call.1} parent=35 // pred_check
          %p187 = pneg %p84
        $region38: #{tpu_custom_call.1} parent=35 // pred_check_branch
          %189 = sbr.rel (%p187) target = $region40
        $region39: #{tpu_custom_call.1} parent=35 // pred_region
          %190 = dma.done [#allocation3], 256
        $region40: #{tpu_custom_call.1} parent=35 // pred_fallthru
          _
        %p191 = scmp.lt.s32.totalorder %s16, 1
        %s192 = scalar_select %p191, %s16, 1
        %s193 = smul.addr %s192, 8
        %s194 = scalar_lea.vmem %s0, %s193
        %p195 = pneg %p37
        %p196 = pneg %p34
        %p197 = scmp.lt.s32.totalorder %s16, 1
        %s198 = scalar_select %p197, %s16, 1
        %s199 = smul.addr %s198, 8
        %s200 = scalar_lea.vmem %s1, %s199
        %p201 = pneg %p63
        %p202 = pneg %p60
        %p203 = pneg %p84
        %p204 = pneg %p81
        %p205 = pneg %p105
        %p206 = pneg %p102
        %p207 = pneg %p131
        %p208 = pneg %p128
        %p209 = scmp.lt.s32.totalorder %s16, 1
        %s210 = scalar_select %p209, %s16, 1
        %s211 = scalar_lea.vmem %s4, %s210
        %p212 = scmp.lt.s32.totalorder %s16, 1
        %s213 = scalar_select %p212, %s16, 1
        %s214 = smul.addr %s213, 8
        %s215 = scalar_lea.vmem %s0, %s214
        %p216 = scmp.lt.s32.totalorder %s16, 1
        %s217 = scalar_select %p216, %s16, 1
        %s218 = smul.addr %s217, 8
        %s219 = scalar_lea.vmem %s1, %s218
        %p220 = scmp.lt.s32.totalorder %s16, 1
        %s221 = scalar_select %p220, %s16, 1
        %s222 = scalar_lea.vmem %s4, %s221
        %v224 = vld [vmem:[%s215] sm:$0xff]
        %v225 = vpack.c.bf16 %v224, %v224
        %v226 = vld [vmem:[#allocation2] sm:$0xf]
        %v227 = vld [vmem:[#allocation2 + $0x4] sm:$0xf]
        %v228 = vld [vmem:[#allocation2 + $0x8] sm:$0xf]
        %v229 = vld [vmem:[#allocation2 + $0xc] sm:$0xf]
        %v230 = vld [vmem:[%s3] sm:$0x1]
        %v232 = vlaneseq
        %v233 = vshrl.u32 %v232, 7
        %v234 = vsub.s32 0, %v233
        %v235 = vrot.slane %v230, %v234
        %v241 = vunpack.c.l.b16 %v226
        %v242 = vunpack.c.l.b16 %v227
        %v243 = vunpack.c.l.b16 %v228
        %v244 = vunpack.c.l.b16 %v229
        %v245 = vpack.c.b16 %v242, %v241
        %v246 = vpack.c.b16 %v244, %v243
        %vm249 = vcmask 261120
        %v251 = vsel %vm249, %v225, 0
        %253 = vmatprep.subr.bf16.mxu0 0
        %254 = vmatpush1.bf16.msra.mxu0 0
        %255 = vmatprep.subr.bf16.mxu0 0
        %256 = vmatpush1.bf16.msra.mxu0 0
        %257 = vmatprep.subr.bf16.mxu0 0
        %258 = vmatpush1.bf16.msra.mxu0 0
        %259 = vmatprep.subr.bf16.mxu0 0
        %260 = vmatpush1.bf16.msra.mxu0 0
        %261 = vmatprep.subr.bf16.mxu0 0
        %262 = vmatpush1.bf16.msra.mxu0 0
        %263 = vmatprep.subr.bf16.mxu0 0
        %264 = vmatpush1.bf16.msra.mxu0 0
        %265 = vmatprep.subr.bf16.mxu0 0
        %266 = vmatpush1.bf16.msra.mxu0 %v246
        %267 = vmatprep.subr.bf16.mxu0 0
        %268 = vmatpush1.bf16.msra.mxu0 %v245
        %269 = vmatprep.subr.bf16.mxu0 0
        %270 = vmatpush2.bf16.msra.mxu0 0
        %271 = vmatprep.subr.bf16.mxu0 0
        %272 = vmatpush2.bf16.msra.mxu0 0
        %273 = vmatprep.subr.bf16.mxu0 0
        %274 = vmatpush2.bf16.msra.mxu0 0
        %275 = vmatprep.subr.bf16.mxu0 0
        %276 = vmatpush2.bf16.msra.mxu0 0
        %277 = vmatprep.subr.bf16.mxu0 0
        %278 = vmatpush2.bf16.msra.mxu0 0
        %279 = vmatprep.subr.bf16.mxu0 0
        %280 = vmatpush2.bf16.msra.mxu0 0
        %281 = vmatprep.subr.bf16.mxu0 0
        %282 = vmatpush2.bf16.msra.mxu0 0
        %283 = vmatprep.subr.bf16.mxu0 0
        %284 = vmatpush2.bf16.msra.mxu0 0
        %285 = vmatprep.mubr.bf16.mxu0 0
        %286 = vmatmul.mubr.bf16.gmra.mxu0 %v251
        %v287 = vpop.f32.mrf.mxu0
        %v288 = vadd.f32 %v235, %v287
        %v289 = vpop.f32.mrf.mxu0
        %v290 = vpop.f32.mrf.mxu0
        %v291 = vpop.f32.mrf.mxu0
        %292 = vdwg.mxu0
        %v293 = vlaneseq
        %v294 = vshrl.u32 %v293, 7
        %s295 = smul.u32 %s16, 8
        %v296 = vstv %s295
        %v297 = vadd.s32 %v294, %v296
        %vm298 = vcmp.lt.s32.totalorder %v297, 16
        %v299 = vld [vmem:[%s219] sm:$0xff]
        %v300 = vsub.f32 %v288, %v299
        %v301 = vmul.f32 %v300, %v300
        %vm302 = vcmask 31744
        %v303 = vsel %vm302, %v301, 0.0
        %304 = vadd.xlane.f32.xlu0 %v303
        %v305 = vpop.xlane.xlu0 %304
        %v306 = vmul.f32 %v305, %v299
        %v307 = vsel %vm298, %v306, 0.0
        %vm308 = vcmask 39968
        %v309 = vsel %vm308, %v307, 0.0
        %v310 = vrot.slane %v309, 4
        %v311 = vadd.f32 %v309, %v310
        %v312 = vrot.slane %v311, 2
        %v313 = vadd.f32 %v311, %v312
        %v314 = vrot.slane %v313, 1
        %v315 = vadd.f32 %v313, %v314
        %317 = vrot.lane.b32.xlu0 %v315, 124
        %v318 = vpop.permute.xlu0 %317
        %vm320 = vcmask 0
        %321 = vst.msk [vmem:[%s222] sm:$0x1] %vm320, %v318
        %p322 = scmp.lt.s32.totalorder %s16, 1
        %s323 = scalar_select %p322, %s16, 1
        %s324 = scalar_lea.vmem %s4, %s323
        // Predicated region
        $region41: #{tpu_custom_call.1} parent=35 // pred_check
          %p325 = pneg %p128
        $region42: #{tpu_custom_call.1} parent=35 // pred_check_branch
          %327 = sbr.rel (%p325) target = $region44
        $region43: #{tpu_custom_call.1} parent=35 // pred_region
          _
        $region44: #{tpu_custom_call.1} parent=35 // pred_fallthru
          _
      $region36: #{tpu_custom_call.1} parent=5 // pred_fallthru
        _
      %p328 = scmp.le.s32.totalorder 2, %s11
      // Predicated region
      $region45: #{tpu_custom_call.1} parent=5 // pred_check
        %p329 = pneg %p328
      $region46: #{tpu_custom_call.1} parent=5 // pred_check_branch
        %331 = sbr.rel (%p329) target = $region48
      $region47: #{tpu_custom_call.1} parent=5 // pred_region
        %s332 = ssub.s32 %s11, 2
        // Predicated region
        $region49: #{tpu_custom_call.1} parent=47 // pred_check
          %p333 = pneg %p134
        $region50: #{tpu_custom_call.1} parent=47 // pred_check_branch
          %335 = sbr.rel (%p333) target = $region52
        $region51: #{tpu_custom_call.1} parent=47 // pred_region
          %p336 = scmp.lt.s32.totalorder %s17, 1
          %s337 = scalar_select %p336, %s17, 1
          %s338 = scalar_lea.vmem %s4, %s337
        $region52: #{tpu_custom_call.1} parent=47 // pred_fallthru
          _
      $region48: #{tpu_custom_call.1} parent=5 // pred_fallthru
        _
    $region6: #{tpu_custom_call.1} parent=1 // loop_footer
      %s15 = sadd.s32 1, %s11
    $region7: #{tpu_custom_call.1} parent=1 // loop_footer_branch
      %10 = sbr.rel target = $region3
    $region8: #{tpu_custom_call.1} parent=1 // loop_exit
      _
    %339 = vsyncpa [#allocation3], 1
    %s340 = scalar_lea.sflag [#allocation3], 1
    %341 = vsyncpa %s340, 1

</llo_original>
